<compile_context>
chip_gen: v7x
topology: tpu7x:2x2x1
jax: 0.10.0
libtpu: 0.0.40
codegen_flags: <defaults>
</compile_context>

<pallas_src>
import numpy as np
import jax
import jax.numpy as jnp
from jax.experimental import pallas as pl
from jax.experimental.pallas import tpu as pltpu


# ----------------------------------------------------------------------------
# Kernel: pure element-wise FMA on (b, tile_t, d) blocks.
# ----------------------------------------------------------------------------
def _rope_kernel(x_ref, u_ref, cos_ref, ssin_ref, o_ref):
    x = x_ref[...].astype(jnp.float32)        # (b, Tt, d)  original x block
    u = u_ref[...].astype(jnp.float32)        # (b, Tt, d)  batch-mixed, pair-swapped x
    cos = cos_ref[...][None]                  # (1, Tt, d)  broadcast over batch dim
    ssin = ssin_ref[...][None]                # (1, Tt, d)  sin with the +-1 sign folded in
    o_ref[...] = (cos * x + ssin * u).astype(o_ref.dtype)


# ----------------------------------------------------------------------------
# Host/XLA-side helpers.
# ----------------------------------------------------------------------------
def _trig_tables(t, d):
    """cos(m*theta) and sign-folded sin(m*theta), both shape (t, d), f32."""
    i = jnp.arange(1, d // 2 + 1, dtype=jnp.float32)
    theta = 10000.0 ** (-2.0 * (i - 1.0) / d)                 # (d//2,)
    theta = jnp.stack([theta, theta], axis=-1).reshape(-1)    # (d,) = [t0,t0,t1,t1,...]
    m = jnp.arange(t, dtype=jnp.float32)[:, None]             # (t, 1)
    ang = m * theta[None, :]                                  # (t, d)
    # torch negates channel 0 after the transpose -> even output columns get -1.
    sign = jnp.where(jnp.arange(d) % 2 == 0, -1.0, 1.0).astype(jnp.float32)
    return jnp.cos(ang), jnp.sin(ang) * sign[None, :]


def _shuffled_operand(x):
    """u[p, t, q] = x[i, t, 2k + 1 - j] with n = p*d + q, k = n//(2b),
    i = (n % (2b)) // 2, j = n % 2  -- i.e. exactly torch's
    view(b,d//2,2) -> stack(odd,even) -> .T -> reshape(b,d) shuffle (unsigned)."""
    b, t, d = x.shape
    h = d // 2
    x4 = x.reshape(b, t, h, 2)                               # [i, t, k, c]
    w4 = x4[..., ::-1]                                       # pair swap: [i,t,k,j] = x[i,t,2k+1-j]
    u = jnp.transpose(w4, (1, 2, 0, 3)).reshape(t, b, d)     # per-t flatten over (k, i, j)
    return jnp.transpose(u, (1, 0, 2))                       # (b, t, d)


def _pick_tile_t(b, t, d, itemsize, vmem_budget=12 * 1024 * 1024):
    """Largest time tile that is a multiple of 8 (or the full extent when
    t < 8) and keeps the double-buffered working set (x, u, out blocks in the
    input dtype + two f32 table blocks) under the VMEM budget."""
    if t < 8:
        return t
    for cand in (2048, 1024, 512, 256, 128, 64, 32, 16, 8):
        if cand > t:
            continue
        per_buf = cand * d * (3 * b * itemsize + 2 * 4)
        if 2 * per_buf <= vmem_budget:
            return cand
    return 8


def rotary_embedding(x):
    b, t, d = x.shape
    assert d % 2 == 0

    cos_tab, ssin_tab = _trig_tables(t, d)     # (t, d) f32 each (constant-folded)
    u = _shuffled_operand(x)                   # (b, t, d), same dtype as x

    tile_t = _pick_tile_t(b, t, d, x.dtype.itemsize)
    grid = (pl.cdiv(t, tile_t),)

    bspec_x = pl.BlockSpec((b, tile_t, d), lambda ti: (0, ti, 0))
    bspec_tab = pl.BlockSpec((tile_t, d), lambda ti: (ti, 0))

    return pl.pallas_call(
        _rope_kernel,
        out_shape=jax.ShapeDtypeStruct((b, t, d), x.dtype),
        grid=grid,
        in_specs=[bspec_x, bspec_x, bspec_tab, bspec_tab],
        out_specs=bspec_x,
        compiler_params=pltpu.CompilerParams(
            dimension_semantics=("parallel",)),
    )(x, u, cos_tab, ssin_tab)


# ----------------------------------------------------------------------------
# Reference: direct NumPy transcription of the PyTorch forward.
# ----------------------------------------------------------------------------
def _reference_numpy(x):
    b, t, d = x.shape
    i = np.arange(1, d // 2 + 1, dtype=np.float32)
    theta = (10000.0 ** (-2.0 * (i - 1.0) / d)).astype(np.float32)
    theta = np.stack([theta, theta], axis=-1).reshape(-1)         # (d,)
    results = []
    for m in range(t):
        xm = x[:, m, :]
        term1 = np.cos(m * theta) * xm
        xm2 = xm.reshape(b, d // 2, 2)
        xm3 = np.stack([xm2[:, :, 1], xm2[:, :, 0]])              # (2, b, d//2)
        xm3 = np.ascontiguousarray(np.transpose(xm3, (2, 1, 0)))  # .T -> (d//2, b, 2)
        xm3[:, :, 0] *= -1.0
        xm4 = xm3.reshape(b, d)
        term2 = np.sin(m * theta) * xm4
        results.append(term1 + term2)
    return np.stack(results, axis=1)


if __name__ == "__main__":
    key = jax.random.PRNGKey(0)
    b, t, d = 2, 8, 32
    x = jax.random.normal(key, (b, t, d), dtype=jnp.float32)

    rope = jax.jit(rotary_embedding)
    out = jax.block_until_ready(rope(x))
    assert out.shape == (b, t, d)

    ref = _reference_numpy(np.asarray(x, dtype=np.float32))
    np.testing.assert_allclose(np.asarray(out), ref, rtol=1e-4, atol=1e-4)
    print("KERNEL_OK")
</pallas_src>

<mosaic_0001>
module attributes {stable_mosaic.version = 11 : i64} {
  func.func @_rope_kernel(%arg0: i32, %arg1: memref<2x8x32xf32, #tpu.memory_space<vmem>>, %arg2: memref<2x8x32xf32, #tpu.memory_space<vmem>>, %arg3: memref<8x32xf32, #tpu.memory_space<vmem>>, %arg4: memref<8x32xf32, #tpu.memory_space<vmem>>, %arg5: memref<2x8x32xf32, #tpu.memory_space<vmem>>) attributes {dimension_semantics = [#tpu.dimension_semantics<parallel>], iteration_bounds = array<i64: 1>, scalar_prefetch = 0 : i64, scratch_operands = 0 : i64, tpu.core_type = #tpu.core_type<tc>, window_params = [{transform_indices = @transform_0, window_bounds = array<i64: 2, 8, 32>}, {transform_indices = @transform_1, window_bounds = array<i64: 2, 8, 32>}, {transform_indices = @transform_2, window_bounds = array<i64: 8, 32>}, {transform_indices = @transform_3, window_bounds = array<i64: 8, 32>}, {transform_indices = @transform_4, window_bounds = array<i64: 2, 8, 32>}]} {
    %c0 = arith.constant 0 : index
    %c0_0 = arith.constant 0 : index
    %c0_1 = arith.constant 0 : index
    %0 = vector.load %arg1[%c0, %c0_0, %c0_1] : memref<2x8x32xf32, #tpu.memory_space<vmem>>, vector<2x8x32xf32>
    %c0_2 = arith.constant 0 : index
    %c0_3 = arith.constant 0 : index
    %c0_4 = arith.constant 0 : index
    %1 = vector.load %arg2[%c0_2, %c0_3, %c0_4] : memref<2x8x32xf32, #tpu.memory_space<vmem>>, vector<2x8x32xf32>
    %c0_5 = arith.constant 0 : index
    %c0_6 = arith.constant 0 : index
    %2 = vector.load %arg3[%c0_5, %c0_6] : memref<8x32xf32, #tpu.memory_space<vmem>>, vector<8x32xf32>
    %3 = vector.shape_cast %2 : vector<8x32xf32> to vector<1x8x32xf32>
    %c0_7 = arith.constant 0 : index
    %c0_8 = arith.constant 0 : index
    %4 = vector.load %arg4[%c0_7, %c0_8] : memref<8x32xf32, #tpu.memory_space<vmem>>, vector<8x32xf32>
    %5 = vector.shape_cast %4 : vector<8x32xf32> to vector<1x8x32xf32>
    %6 = vector.broadcast %3 : vector<1x8x32xf32> to vector<2x8x32xf32>
    %7 = arith.mulf %6, %0 : vector<2x8x32xf32>
    %8 = vector.broadcast %5 : vector<1x8x32xf32> to vector<2x8x32xf32>
    %9 = arith.mulf %8, %1 : vector<2x8x32xf32>
    %10 = arith.addf %7, %9 : vector<2x8x32xf32>
    %c0_9 = arith.constant 0 : index
    %c0_10 = arith.constant 0 : index
    %c0_11 = arith.constant 0 : index
    %11 = vector.load %arg5[%c0_9, %c0_10, %c0_11] : memref<2x8x32xf32, #tpu.memory_space<vmem>>, vector<2x8x32xf32>
    tpu.vector_store %arg5[%c0_9, %c0_10, %c0_11], %10 {strides = array<i32>} : memref<2x8x32xf32, #tpu.memory_space<vmem>>, vector<2x8x32xf32>,
    return
  }
  func.func @transform_0(%arg0: i32) -> (i32, i32, i32) {
    %c0_i32 = arith.constant 0 : i32
    %c0_i32_0 = arith.constant 0 : i32
    %c0_i32_1 = arith.constant 0 : i32
    return %c0_i32, %arg0, %c0_i32_0 : i32, i32, i32
  }
  func.func @transform_1(%arg0: i32) -> (i32, i32, i32) {
    %c0_i32 = arith.constant 0 : i32
    %c0_i32_0 = arith.constant 0 : i32
    %c0_i32_1 = arith.constant 0 : i32
    return %c0_i32, %arg0, %c0_i32_0 : i32, i32, i32
  }
  func.func @transform_2(%arg0: i32) -> (i32, i32) {
    %c0_i32 = arith.constant 0 : i32
    %c0_i32_0 = arith.constant 0 : i32
    return %arg0, %c0_i32 : i32, i32
  }
  func.func @transform_3(%arg0: i32) -> (i32, i32) {
    %c0_i32 = arith.constant 0 : i32
    %c0_i32_0 = arith.constant 0 : i32
    return %arg0, %c0_i32 : i32, i32
  }
  func.func @transform_4(%arg0: i32) -> (i32, i32, i32) {
    %c0_i32 = arith.constant 0 : i32
    %c0_i32_0 = arith.constant 0 : i32
    %c0_i32_1 = arith.constant 0 : i32
    return %c0_i32, %arg0, %c0_i32_0 : i32, i32, i32
  }
}

</mosaic_0001>

<llo_original>
// kernel: mul.17
$region0: #{mul.17}
  %s0 = inlined_call_operand.vmem [shape: f32[16,2], index: 0, kind: input, shape index: {}]
  %s1 = inlined_call_operand.vmem [shape: f32[32], index: 1, kind: output, shape index: {}]
  $region1: #{mul.17} parent=0
    #allocation0 [shape = 'u8[4096]{0}', space=vmem, size = 0x1000, scoped, tag = 'scoped mem for output reshape']
    %v2 = vld [vmem:[%s0] sm:$0x1]
    %vm3 = vcmask 15360
    %4 = vst.msk [vmem:[#allocation0] sm:$0x1] %vm3, %v2
    %s5 = scalar_lea.vmem %s0, 15
    %v6 = vld [vmem:[%s5] sm:$0x1]
    %7 = vrot.lane.b32.xlu0 %v6, 30
    %v8 = vpop.permute.xlu0 %7
    %vm9 = vcmask 261360
    %10 = vst.msk [vmem:[#allocation0] sm:$0x1] %vm9, %v8
    %s11 = scalar_lea.vmem %s0, 14
    %v12 = vld [vmem:[%s11] sm:$0x1]
    %13 = vrot.lane.b32.xlu0 %v12, 28
    %v14 = vpop.permute.xlu0 %13
    %vm15 = vcmask 244960
    %16 = vst.msk [vmem:[#allocation0] sm:$0x1] %vm15, %v14
    %s17 = scalar_lea.vmem %s0, 13
    %v18 = vld [vmem:[%s17] sm:$0x1]
    %19 = vrot.lane.b32.xlu0 %v18, 26
    %v20 = vpop.permute.xlu0 %19
    %vm21 = vcmask 228560
    %22 = vst.msk [vmem:[#allocation0] sm:$0x1] %vm21, %v20
    %s23 = scalar_lea.vmem %s0, 12
    %v24 = vld [vmem:[%s23] sm:$0x1]
    %25 = vrot.lane.b32.xlu0 %v24, 24
    %v26 = vpop.permute.xlu0 %25
    %vm27 = vcmask 212160
    %28 = vst.msk [vmem:[#allocation0] sm:$0x1] %vm27, %v26
    %s29 = scalar_lea.vmem %s0, 11
    %v30 = vld [vmem:[%s29] sm:$0x1]
    %31 = vrot.lane.b32.xlu0 %v30, 22
    %v32 = vpop.permute.xlu0 %31
    %vm33 = vcmask 195760
    %34 = vst.msk [vmem:[#allocation0] sm:$0x1] %vm33, %v32
    %s35 = scalar_lea.vmem %s0, 10
    %v36 = vld [vmem:[%s35] sm:$0x1]
    %37 = vrot.lane.b32.xlu0 %v36, 20
    %v38 = vpop.permute.xlu0 %37
    %vm39 = vcmask 179360
    %40 = vst.msk [vmem:[#allocation0] sm:$0x1] %vm39, %v38
    %s41 = scalar_lea.vmem %s0, 9
    %v42 = vld [vmem:[%s41] sm:$0x1]
    %43 = vrot.lane.b32.xlu0 %v42, 18
    %v44 = vpop.permute.xlu0 %43
    %vm45 = vcmask 162960
    %46 = vst.msk [vmem:[#allocation0] sm:$0x1] %vm45, %v44
    %s47 = scalar_lea.vmem %s0, 8
    %v48 = vld [vmem:[%s47] sm:$0x1]
    %49 = vrot.lane.b32.xlu0 %v48, 16
    %v50 = vpop.permute.xlu0 %49
    %vm51 = vcmask 146560
    %52 = vst.msk [vmem:[#allocation0] sm:$0x1] %vm51, %v50
    %s53 = scalar_lea.vmem %s0, 7
    %v54 = vld [vmem:[%s53] sm:$0x1]
    %55 = vrot.lane.b32.xlu0 %v54, 14
    %v56 = vpop.permute.xlu0 %55
    %vm57 = vcmask 130160
    %58 = vst.msk [vmem:[#allocation0] sm:$0x1] %vm57, %v56
    %s59 = scalar_lea.vmem %s0, 6
    %v60 = vld [vmem:[%s59] sm:$0x1]
    %61 = vrot.lane.b32.xlu0 %v60, 12
    %v62 = vpop.permute.xlu0 %61
    %vm63 = vcmask 113760
    %64 = vst.msk [vmem:[#allocation0] sm:$0x1] %vm63, %v62
    %s65 = scalar_lea.vmem %s0, 5
    %v66 = vld [vmem:[%s65] sm:$0x1]
    %67 = vrot.lane.b32.xlu0 %v66, 10
    %v68 = vpop.permute.xlu0 %67
    %vm69 = vcmask 97360
    %70 = vst.msk [vmem:[#allocation0] sm:$0x1] %vm69, %v68
    %s71 = scalar_lea.vmem %s0, 4
    %v72 = vld [vmem:[%s71] sm:$0x1]
    %73 = vrot.lane.b32.xlu0 %v72, 8
    %v74 = vpop.permute.xlu0 %73
    %vm75 = vcmask 80960
    %76 = vst.msk [vmem:[#allocation0] sm:$0x1] %vm75, %v74
    %s77 = scalar_lea.vmem %s0, 3
    %v78 = vld [vmem:[%s77] sm:$0x1]
    %79 = vrot.lane.b32.xlu0 %v78, 6
    %v80 = vpop.permute.xlu0 %79
    %vm81 = vcmask 64560
    %82 = vst.msk [vmem:[#allocation0] sm:$0x1] %vm81, %v80
    %s83 = scalar_lea.vmem %s0, 2
    %v84 = vld [vmem:[%s83] sm:$0x1]
    %85 = vrot.lane.b32.xlu0 %v84, 4
    %v86 = vpop.permute.xlu0 %85
    %vm87 = vcmask 48160
    %88 = vst.msk [vmem:[#allocation0] sm:$0x1] %vm87, %v86
    %s89 = scalar_lea.vmem %s0, 1
    %v90 = vld [vmem:[%s89] sm:$0x1]
    %91 = vrot.lane.b32.xlu0 %v90, 2
    %v92 = vpop.permute.xlu0 %91
    %vm93 = vcmask 31760
    %94 = vst.msk [vmem:[#allocation0] sm:$0x1] %vm93, %v92
    %s96 = sshllo.u32 0, 1
    %v98 = vld [vmem:[#allocation0] sm:%s96]
    %s99 = sshllo.u32 0, 1
    %100 = vst [vmem:[%s1] sm:%s99] %v98

// kernel: rotary_embedding.1
$region0: #{rotary_embedding.1}
  #allocation0 [shape = 'u32[]', space=smem, size = 0x4, offset = 0x4, fixed_abs, tag = 'smem constant byte address 0x4 - core index']
  #allocation1 [shape = 'u32[144,128]{1,0:T(1,128)}', space=vmem, size = 0x12000, scoped, tag = 'internal scratch']
  %s0 = inlined_call_operand.vmem [shape: f32[2,8,32], index: 0, kind: input, shape index: {}]
  %s1 = inlined_call_operand.vmem [shape: f32[2,8,32], index: 1, kind: input, shape index: {}]
  %s2 = inlined_call_operand.vmem [shape: f32[8,32], index: 2, kind: input, shape index: {}]
  %s3 = inlined_call_operand.vmem [shape: f32[8,32], index: 3, kind: input, shape index: {}]
  %s4 = inlined_call_operand.hbm [shape: f32[2,8,32], index: 4, kind: output, shape index: {}]
  %s5 = sld [smem:[#allocation0]]
  $region26: #{rotary_embedding.1} parent=0
    _
  %s7 = ssub.s32 1, %s5
  %s8 = scalar_select 0, %s7, %s5
  $region1: #{rotary_embedding.1} parent=0
    #allocation2 [shape = 'u8[8192]{0}', space=vmem, size = 0x2000, scoped, tag = 'output window, operand 0, single buffered']
    #allocation3 [shape = 's32[1]{0}', space=sflag, size = 0x4, scoped, tag = 'scoped memory for rotary_embedding.1']
    %9 = vsyncpa [#allocation3], 0
    // Predicated region
    $region2: #{rotary_embedding.1} parent=1 // pred_check
      _
    $region3: #{rotary_embedding.1} parent=1 // pred_check_branch
      %11 = sbr.rel (0) target = $region5
    $region4: #{rotary_embedding.1} parent=1 // pred_region
      _
    $region5: #{rotary_embedding.1} parent=1 // pred_fallthru
      _
    // Predicated region
    $region6: #{rotary_embedding.1} parent=1 // pred_check
      _
    $region7: #{rotary_embedding.1} parent=1 // pred_check_branch
      %13 = sbr.rel (0) target = $region9
    $region8: #{rotary_embedding.1} parent=1 // pred_region
      _
    $region9: #{rotary_embedding.1} parent=1 // pred_fallthru
      _
    // Predicated region
    $region10: #{rotary_embedding.1} parent=1 // pred_check
      _
    $region11: #{rotary_embedding.1} parent=1 // pred_check_branch
      %15 = sbr.rel (0) target = $region13
    $region12: #{rotary_embedding.1} parent=1 // pred_region
      _
    $region13: #{rotary_embedding.1} parent=1 // pred_fallthru
      _
    // Predicated region
    $region14: #{rotary_embedding.1} parent=1 // pred_check
      _
    $region15: #{rotary_embedding.1} parent=1 // pred_check_branch
      %17 = sbr.rel (0) target = $region17
    $region16: #{rotary_embedding.1} parent=1 // pred_region
      _
    $region17: #{rotary_embedding.1} parent=1 // pred_fallthru
      _
    %v18 = vld [vmem:[%s0] sm:$0xff]
    %v19 = vld [vmem:[%s0 + $0x8] sm:$0xff]
    %v20 = vld [vmem:[%s1] sm:$0xff]
    %v21 = vld [vmem:[%s1 + $0x8] sm:$0xff]
    %v22 = vld [vmem:[%s2] sm:$0xff]
    %v23 = vld [vmem:[%s3] sm:$0xff]
    %v24 = vmul.f32 %v22, %v18
    %v25 = vmul.f32 %v22, %v19
    %v26 = vmul.f32 %v23, %v20
    %v27 = vmul.f32 %v23, %v21
    %v28 = vadd.f32 %v24, %v26
    %v29 = vadd.f32 %v25, %v27
    %vm30 = vcmask 261120
    %31 = vst.msk [vmem:[#allocation2] sm:$0xff] %vm30, %v28
    %32 = vst.msk [vmem:[#allocation2 + $0x8] sm:$0xff] %vm30, %v29
    // Predicated region
    $region18: #{rotary_embedding.1} parent=1 // pred_check
      _
    $region19: #{rotary_embedding.1} parent=1 // pred_check_branch
      %34 = sbr.rel (0) target = $region21
    $region20: #{rotary_embedding.1} parent=1 // pred_region
      %s36 = ssub.s32 256, 256
      %37 = vsyncadd [#allocation3], %s36
      %s38 = sshll.u32 [#allocation2], 4
      %s39 = int_to_ptr.vmem [resolvable:$true] %s38
      %44 = dma.vmem_to_hbm [thread:$0]  %s39, 256, %s4, [#allocation3], 128, 128, 8
    $region21: #{rotary_embedding.1} parent=1 // pred_fallthru
      _
    // Predicated region
    $region22: #{rotary_embedding.1} parent=1 // pred_check
      _
    $region23: #{rotary_embedding.1} parent=1 // pred_check_branch
      %46 = sbr.rel (0) target = $region25
    $region24: #{rotary_embedding.1} parent=1 // pred_region
      %47 = dma.done [#allocation3], 256
    $region25: #{rotary_embedding.1} parent=1 // pred_fallthru
      _
    %48 = vsyncpa [#allocation3], 1

</llo_original>
